<compile_context>
chip_gen: v7x
topology: tpu7x:2x2x1
jax: 0.10.0
libtpu: 0.0.40
codegen_flags: <defaults>
</compile_context>

<pallas_src>
import functools

import jax
import jax.numpy as jnp
from jax.experimental import pallas as pl
from jax.experimental.pallas import tpu as pltpu


def _round_up(x, m):
    return (x + m - 1) // m * m


def _focal_ce_partial_kernel(logits_ref, target_ref, partial_ref, *,
                             block_n, n_valid):
    """Per-tile partial sum of cross-entropy over TN rows."""
    i = pl.program_id(0)

    logits = logits_ref[...].astype(jnp.float32)          # (TN, C) upcast in-kernel
    tgt = target_ref[...]                                  # (TN, 1) int32
    tn, c = logits.shape

    # Numerically stable log-softmax pieces.
    m = jnp.max(logits, axis=-1, keepdims=True)            # (TN, 1)
    shifted = logits - m                                    # (TN, C)
    sumexp = jnp.sum(jnp.exp(shifted), axis=-1, keepdims=True)  # (TN, 1)

    # Target logit via where-mask on shifted logits (no one-hot multiply).
    class_ids = jax.lax.broadcasted_iota(jnp.int32, (tn, c), 1)
    tgt_shifted = jnp.sum(jnp.where(class_ids == tgt, shifted, 0.0),
                          axis=-1, keepdims=True)           # (TN, 1)

    ce = jnp.log(sumexp) - tgt_shifted                      # (TN, 1) per-row CE

    # Mask rows that are padding (global row index >= N).
    row_ids = i * block_n + jax.lax.broadcasted_iota(jnp.int32, (tn, 1), 0)
    ce = jnp.where(row_ids < n_valid, ce, 0.0)

    tile_sum = jnp.sum(ce)
    # Broadcast the scalar into the aligned (8, 128) output block.
    partial_ref[...] = jnp.broadcast_to(tile_sum, partial_ref.shape).astype(jnp.float32)


def focal_loss(logits, targets, gamma=0.0, eps=1e-7, block_rows=None):
    """Pallas equivalent of FocalLoss.forward(input, target).

    logits : (N, C) float array (unnormalized class scores), any float dtype.
    targets: (N,)   int class indices.
    Returns a float32 scalar.
    """
    del eps  # defined in the PyTorch module but never used in forward
    n, c = logits.shape
    targets2d = targets.astype(jnp.int32).reshape(n, 1)

    # --- pick a tile height: multiple of the sublane pack, capped so a
    #     double-buffered logits block stays well inside scoped VMEM on every
    #     generation (v5e default 16 MiB, v7x physical 64 MiB). ---
    itemsize = jnp.dtype(logits.dtype).itemsize
    sublane = {1: 32, 2: 16, 4: 8}.get(itemsize, 8)
    if block_rows is None:
        rows_cap = max(sublane, ((4 * 1024 * 1024) // max(1, c * itemsize))
                       // sublane * sublane)                 # ~4 MiB/block
        block_n = min(_round_up(n, sublane), 512, rows_cap)
    else:
        block_n = block_rows
    block_n = max(sublane, _round_up(block_n, sublane))

    num_tiles = pl.cdiv(n, block_n)
    n_padded = num_tiles * block_n
    if n_padded != n:
        logits = jnp.pad(logits, ((0, n_padded - n), (0, 0)))
        targets2d = jnp.pad(targets2d, ((0, n_padded - n), (0, 0)))

    kernel = functools.partial(_focal_ce_partial_kernel,
                               block_n=block_n, n_valid=n)

    partials = pl.pallas_call(
        kernel,
        out_shape=jax.ShapeDtypeStruct((num_tiles * 8, 128), jnp.float32),
        grid=(num_tiles,),
        in_specs=[
            pl.BlockSpec((block_n, c), lambda i: (i, 0)),   # logits tile
            pl.BlockSpec((block_n, 1), lambda i: (i, 0)),   # targets tile
        ],
        out_specs=pl.BlockSpec((8, 128), lambda i: (i, 0)),  # per-tile partial sum
        compiler_params=pltpu.CompilerParams(
            dimension_semantics=("parallel",)),
    )(logits, targets2d)

    # Finalize in the wrapper: mean CE + focal transform (3 scalar ops).
    logp = jnp.sum(partials[::8, 0]) / jnp.float32(n)        # mean cross entropy

    if float(gamma) == 0.0:                                  # trace-time fast path
        return logp.astype(jnp.float32)

    p = jnp.exp(-logp)
    one_minus_p = jnp.maximum(1.0 - p, 0.0)                  # clamp vs fp round-off
    return (one_minus_p ** gamma * logp).astype(jnp.float32)


def _reference(logits, targets, gamma):
    # Pure-JAX reference mirroring torch CrossEntropyLoss(mean) + focal transform.
    logits = logits.astype(jnp.float32)
    logz = jax.nn.logsumexp(logits, axis=-1)
    tgt_logit = jnp.take_along_axis(logits, targets[:, None], axis=-1)[:, 0]
    logp = jnp.mean(logz - tgt_logit)
    p = jnp.exp(-logp)
    return (1.0 - p) ** gamma * logp


if __name__ == "__main__":
    key = jax.random.PRNGKey(0)
    k1, k2, k3, k4 = jax.random.split(key, 4)

    # Case 1: small shape matching the module's toy use, gamma > 0 path.
    N1, C1, G1 = 8, 16, 2.0
    logits1 = jax.random.normal(k1, (N1, C1), dtype=jnp.float32)
    targets1 = jax.random.randint(k2, (N1,), 0, C1, dtype=jnp.int32)
    out1 = jax.block_until_ready(focal_loss(logits1, targets1, gamma=G1))
    ref1 = _reference(logits1, targets1, G1)
    assert jnp.allclose(out1, ref1, rtol=1e-5, atol=1e-6), (out1, ref1)

    # Case 2: multi-tile grid (N not a multiple of the block -> padding/masking)
    #         and the gamma == 0 fast path (module default).
    N2, C2, G2 = 20, 32, 0.0
    logits2 = jax.random.normal(k3, (N2, C2), dtype=jnp.float32)
    targets2 = jax.random.randint(k4, (N2,), 0, C2, dtype=jnp.int32)
    out2 = jax.block_until_ready(focal_loss(logits2, targets2, gamma=G2,
                                            block_rows=8))
    ref2 = _reference(logits2, targets2, G2)
    assert jnp.allclose(out2, ref2, rtol=1e-5, atol=1e-6), (out2, ref2)

    print("KERNEL_OK")
</pallas_src>

<mosaic_0001>
module attributes {stable_mosaic.version = 11 : i64} {
  func.func @_focal_ce_partial_kernel(%arg0: i32, %arg1: memref<8x16xf32, #tpu.memory_space<vmem>>, %arg2: memref<8x1xi32, #tpu.memory_space<vmem>>, %arg3: memref<8x128xf32, #tpu.memory_space<vmem>>) attributes {dimension_semantics = [#tpu.dimension_semantics<parallel>], iteration_bounds = array<i64: 1>, scalar_prefetch = 0 : i64, scratch_operands = 0 : i64, tpu.core_type = #tpu.core_type<tc>, window_params = [{transform_indices = @transform_0, window_bounds = array<i64: 8, 16>}, {transform_indices = @transform_1, window_bounds = array<i64: 8, 1>}, {transform_indices = @transform_2, window_bounds = array<i64: 8, 128>}]} {
    %c0 = arith.constant 0 : index
    %c0_0 = arith.constant 0 : index
    %0 = vector.load %arg1[%c0, %c0_0] : memref<8x16xf32, #tpu.memory_space<vmem>>, vector<8x16xf32>
    %c0_1 = arith.constant 0 : index
    %c0_2 = arith.constant 0 : index
    %1 = vector.load %arg2[%c0_1, %c0_2] : memref<8x1xi32, #tpu.memory_space<vmem>>, vector<8x1xi32>
    %cst = arith.constant dense<0xFF800000> : vector<8xf32>
    %2 = vector.multi_reduction <maximumf>, %0, %cst [1] : vector<8x16xf32> to vector<8xf32>
    %3 = vector.shape_cast %2 : vector<8xf32> to vector<8x1xf32>
    %4 = vector.broadcast %3 : vector<8x1xf32> to vector<8x16xf32>
    %5 = arith.subf %0, %4 : vector<8x16xf32>
    %6 = math.exp %5 : vector<8x16xf32>
    %cst_3 = arith.constant dense<0.000000e+00> : vector<8xf32>
    %7 = vector.multi_reduction <add>, %6, %cst_3 [1] : vector<8x16xf32> to vector<8xf32>
    %8 = vector.shape_cast %7 : vector<8xf32> to vector<8x1xf32>
    %9 = tpu.iota {dimensions = array<i32: 1>} : vector<8x16xi32>
    %10 = vector.broadcast %1 : vector<8x1xi32> to vector<8x16xi32>
    %11 = arith.cmpi eq, %9, %10 : vector<8x16xi32>
    %cst_4 = arith.constant 0.000000e+00 : f32
    %12 = vector.broadcast %cst_4 : f32 to vector<8x16xf32>
    %13 = arith.select %11, %5, %12 : vector<8x16xi1>, vector<8x16xf32>
    %cst_5 = arith.constant dense<0.000000e+00> : vector<8xf32>
    %14 = vector.multi_reduction <add>, %13, %cst_5 [1] : vector<8x16xf32> to vector<8xf32>
    %15 = vector.shape_cast %14 : vector<8xf32> to vector<8x1xf32>
    %16 = math.log %8 : vector<8x1xf32>
    %17 = arith.subf %16, %15 : vector<8x1xf32>
    %c8_i32 = arith.constant 8 : i32
    %18 = arith.muli %arg0, %c8_i32 : i32
    %19 = tpu.iota {dimensions = array<i32: 0>} : vector<8x1xi32>
    %20 = vector.broadcast %18 : i32 to vector<8x1xi32>
    %21 = arith.addi %20, %19 : vector<8x1xi32>
    %c8_i32_6 = arith.constant 8 : i32
    %22 = vector.broadcast %c8_i32_6 : i32 to vector<8x1xi32>
    %23 = arith.cmpi slt, %21, %22 : vector<8x1xi32>
    %cst_7 = arith.constant 0.000000e+00 : f32
    %24 = vector.broadcast %cst_7 : f32 to vector<8x1xf32>
    %25 = arith.select %23, %17, %24 : vector<8x1xi1>, vector<8x1xf32>
    %26 = vector.shape_cast %25 : vector<8x1xf32> to vector<1x8x1xf32>
    %cst_8 = arith.constant dense<0.000000e+00> : vector<1xf32>
    %27 = vector.multi_reduction <add>, %26, %cst_8 [1, 2] : vector<1x8x1xf32> to vector<1xf32>
    %28 = vector.shape_cast %27 : vector<1xf32> to vector<1x1x1xf32>
    %29 = vector.extract %28[0, 0, 0] : f32 from vector<1x1x1xf32>
    %30 = vector.broadcast %29 : f32 to vector<8x128xf32>
    %c0_9 = arith.constant 0 : index
    %c0_10 = arith.constant 0 : index
    %31 = vector.load %arg3[%c0_9, %c0_10] : memref<8x128xf32, #tpu.memory_space<vmem>>, vector<8x128xf32>
    tpu.vector_store %arg3[%c0_9, %c0_10], %30 {strides = array<i32>} : memref<8x128xf32, #tpu.memory_space<vmem>>, vector<8x128xf32>,
    return
  }
  func.func @transform_0(%arg0: i32) -> (i32, i32) {
    %c0_i32 = arith.constant 0 : i32
    %c0_i32_0 = arith.constant 0 : i32
    return %arg0, %c0_i32 : i32, i32
  }
  func.func @transform_1(%arg0: i32) -> (i32, i32) {
    %c0_i32 = arith.constant 0 : i32
    %c0_i32_0 = arith.constant 0 : i32
    return %arg0, %c0_i32 : i32, i32
  }
  func.func @transform_2(%arg0: i32) -> (i32, i32) {
    %c0_i32 = arith.constant 0 : i32
    %c0_i32_0 = arith.constant 0 : i32
    return %arg0, %c0_i32 : i32, i32
  }
}

</mosaic_0001>

<llo_original>
// kernel: tpu_custom_call.1
$region0: #{tpu_custom_call.1}
  #allocation0 [shape = 'u32[]', space=smem, size = 0x4, offset = 0x4, fixed_abs, tag = 'smem constant byte address 0x4 - core index']
  #allocation1 [shape = 'u32[144,128]{1,0:T(1,128)}', space=vmem, size = 0x12000, scoped, tag = 'internal scratch']
  %s0 = inlined_call_operand.vmem [shape: f32[8,16], index: 0, kind: input, shape index: {}]
  %s1 = inlined_call_operand.vmem [shape: s32[8,1], index: 1, kind: input, shape index: {}]
  %s2 = inlined_call_operand.hbm [shape: f32[8,128], index: 2, kind: output, shape index: {}]
  %s3 = sld [smem:[#allocation0]]
  $region18: #{tpu_custom_call.1} parent=0
    _
  %s5 = ssub.s32 1, %s3
  %s6 = scalar_select 0, %s5, %s3
  $region1: #{tpu_custom_call.1} parent=0
    #allocation2 [shape = 'u8[4096]{0}', space=vmem, size = 0x1000, scoped, tag = 'output window, operand 0, single buffered']
    #allocation3 [shape = 's32[1]{0}', space=sflag, size = 0x4, scoped, tag = 'scoped memory for tpu_custom_call.1']
    %7 = vsyncpa [#allocation3], 0
    // Predicated region
    $region2: #{tpu_custom_call.1} parent=1 // pred_check
      _
    $region3: #{tpu_custom_call.1} parent=1 // pred_check_branch
      %9 = sbr.rel (0) target = $region5
    $region4: #{tpu_custom_call.1} parent=1 // pred_region
      _
    $region5: #{tpu_custom_call.1} parent=1 // pred_fallthru
      _
    // Predicated region
    $region6: #{tpu_custom_call.1} parent=1 // pred_check
      _
    $region7: #{tpu_custom_call.1} parent=1 // pred_check_branch
      %11 = sbr.rel (0) target = $region9
    $region8: #{tpu_custom_call.1} parent=1 // pred_region
      _
    $region9: #{tpu_custom_call.1} parent=1 // pred_fallthru
      _
    %v12 = vld [vmem:[%s0] sm:$0xff]
    %v13 = vld [vmem:[%s1] sm:$0xff]
    %vm14 = vcmask 130048
    %v15 = vsel %vm14, %v12, -inf
    %16 = vmax.xlane.f32.xlu0 %v15
    %v17 = vpop.xlane.xlu0 %16
    %v18 = vsub.f32 %v12, %v17
    %v19 = vmul.f32 %v18, 1.442695
    %v20 = vpow.pop %v19
    %v21 = vsel %vm14, %v20, 0.0
    %22 = vadd.xlane.f32.xlu0 %v21
    %v23 = vpop.xlane.xlu0 %22
    %v24 = vlaneseq
    %v25 = vand.u32 %v24, 127
    %26 = vset.pattern.permute.xlu0 0
    %27 = vperm.xlu0 %26, %v13
    %v28 = vpop.permute.xlu0 %27
    %vm29 = vcmp.eq.s32.totalorder %v25, %v28
    %v30 = vsel %vm29, %v18, 0.0
    %v31 = vsel %vm14, %v30, 0.0
    %32 = vadd.xlane.f32.xlu0 %v31
    %v33 = vpop.xlane.xlu0 %32
    %v34 = vlog2.pop %v23
    %v35 = vmul.f32 %v34, 0.6931472
    %v36 = vsub.f32 %v35, %v33
    %s37 = smul.u32 0, 8
    %v38 = vlaneseq
    %v39 = vshrl.u32 %v38, 7
    %v40 = vstv %s37
    %v41 = vadd.s32 %v40, %v39
    %vm42 = vcmp.lt.s32.totalorder %v41, 8
    %v43 = vsel %vm42, %v36, 0.0
    %vm44 = vcmask 7168
    %v45 = vsel %vm44, %v43, 0.0
    %46 = vadd.xlane.f32.xlu0 %v45
    %v47 = vpop.xlane.xlu0 %46
    %v48 = vrot.slane %v47, 4
    %v49 = vadd.f32 %v47, %v48
    %v50 = vrot.slane %v49, 2
    %v51 = vadd.f32 %v49, %v50
    %v52 = vrot.slane %v51, 1
    %v53 = vadd.f32 %v51, %v52
    %s54 = vtos %v53
    %v55 = vstv %s54
    %56 = vst [vmem:[#allocation2] sm:$0xff] %v55
    // Predicated region
    $region10: #{tpu_custom_call.1} parent=1 // pred_check
      _
    $region11: #{tpu_custom_call.1} parent=1 // pred_check_branch
      %58 = sbr.rel (0) target = $region13
    $region12: #{tpu_custom_call.1} parent=1 // pred_region
      %s60 = ssub.s32 128, 128
      %61 = vsyncadd [#allocation3], %s60
      %s63 = sshll.u32 [#allocation2], 4
      %s64 = int_to_ptr.vmem [resolvable:$true] %s63
      %66 = dma.vmem_to_hbm [thread:$0]  %s64, 128, %s2, [#allocation3]
    $region13: #{tpu_custom_call.1} parent=1 // pred_fallthru
      _
    // Predicated region
    $region14: #{tpu_custom_call.1} parent=1 // pred_check
      _
    $region15: #{tpu_custom_call.1} parent=1 // pred_check_branch
      %68 = sbr.rel (0) target = $region17
    $region16: #{tpu_custom_call.1} parent=1 // pred_region
      %69 = dma.done [#allocation3], 128
    $region17: #{tpu_custom_call.1} parent=1 // pred_fallthru
      _
    %70 = vsyncpa [#allocation3], 1

</llo_original>
